<compile_context>
chip_gen: v7x
topology: tpu7x:2x2x1
jax: 0.10.0
libtpu: 0.0.40
codegen_flags: <defaults>
</compile_context>

<pallas_src>
import functools

import jax
import jax.numpy as jnp
from jax.experimental import pallas as pl
from jax.experimental.pallas import tpu as pltpu


def _ceil_to(x, m):
    return ((x + m - 1) // m) * m


def _embed_kernel(idx_ref, table_ref, logits_ref):
    # idx_ref: (TN, 1) i32; table_ref: (Vp, Vp) f32; logits_ref: (TN, Vp)
    idx = idx_ref[...]
    table = table_ref[...]
    tn, vp = logits_ref.shape
    lane = jax.lax.broadcasted_iota(jnp.int32, (tn, vp), 1)
    onehot = (lane == idx).astype(jnp.float32)                       # (TN, Vp)
    logits = jnp.dot(onehot, table, preferred_element_type=jnp.float32)
    logits_ref[...] = logits.astype(logits_ref.dtype)                # lane-dense store


def _bigram_loss_kernel(idx_ref, tgt_ref, table_ref, logits_ref, loss_ref,
                        *, lse_lane, n_real):
    # idx_ref/tgt_ref: (TN, 1) i32; table_ref: (Vp, Vp) f32 with per-row LSE
    # precomputed in lane `lse_lane`; logits_ref: (TN, Vp); loss_ref: (TN, 1) f32.
    i = pl.program_id(0)
    idx = idx_ref[...]
    tgt = tgt_ref[...]
    table = table_ref[...]
    tn, vp = logits_ref.shape

    lane = jax.lax.broadcasted_iota(jnp.int32, (tn, vp), 1)
    onehot = (lane == idx).astype(jnp.float32)                       # (TN, Vp)
    logits = jnp.dot(onehot, table, preferred_element_type=jnp.float32)
    logits_ref[...] = logits.astype(logits_ref.dtype)

    # Per-row CE = LSE(row) - logit[target].  The LSE rode along in lane
    # `lse_lane` of the MXU output (targets are always < lse_lane, so the two
    # selects never collide).  One select pass + one lane reduction; no exp.
    sel = jnp.where(lane == lse_lane, logits,
                    jnp.where(lane == tgt, -logits, 0.0))
    per_row = jnp.sum(sel, axis=-1, keepdims=True)                   # (TN, 1)

    # Zero rows that are pure padding (global row >= real N); uses the global
    # grid index so it stays correct under megacore sharding of the axis.
    row = i * tn + jax.lax.broadcasted_iota(jnp.int32, (tn, 1), 0)
    loss_ref[...] = jnp.where(row < n_real, per_row, 0.0)


def bigram_forward(idx, table, targets=None, *, tile_n=2048,
                   logits_dtype=jnp.float32, return_padded=False):
    """Forward pass matching BigramLanguageModel.forward.

    return_padded=True skips the post-kernel slice and returns the raw
    (n_pad, v_pad) logits block: callers must ignore rows >= B*T and lanes
    >= V (lane V holds the per-row LSE on the loss path).
    """
    B, T = idx.shape
    V = table.shape[0]
    N = B * T

    v_pad = _ceil_to(V, 128)                       # lane-dense vocab (keep 128)
    if targets is not None and v_pad == V:
        v_pad += 128                               # spare lane for the LSE column

    row_align = 8 if jnp.dtype(logits_dtype).itemsize >= 4 else 16
    tile_n = _ceil_to(min(tile_n, _ceil_to(N, row_align)), row_align)
    n_pad = _ceil_to(N, tile_n)
    grid = (n_pad // tile_n,)

    table_f32 = table.astype(jnp.float32)
    table_p = jnp.zeros((v_pad, v_pad), jnp.float32).at[:V, :V].set(table_f32)
    idx_p = jnp.zeros((n_pad, 1), jnp.int32).at[:N, 0].set(
        idx.reshape(N).astype(jnp.int32))

    idx_spec = pl.BlockSpec((tile_n, 1), lambda i: (i, 0))
    table_spec = pl.BlockSpec((v_pad, v_pad), lambda i: (0, 0))   # VMEM-resident
    logits_spec = pl.BlockSpec((tile_n, v_pad), lambda i: (i, 0))
    loss_spec = pl.BlockSpec((tile_n, 1), lambda i: (i, 0))

    cparams = pltpu.CompilerParams(dimension_semantics=("parallel",))
    out_bytes = jnp.dtype(logits_dtype).itemsize

    if targets is None:
        cost = pl.CostEstimate(
            flops=2 * n_pad * v_pad * v_pad,
            transcendentals=0,
            bytes_accessed=4 * (n_pad + v_pad * v_pad)
                           + out_bytes * n_pad * v_pad)
        logits = pl.pallas_call(
            _embed_kernel,
            grid=grid,
            out_shape=jax.ShapeDtypeStruct((n_pad, v_pad), logits_dtype),
            in_specs=[idx_spec, table_spec],
            out_specs=logits_spec,
            compiler_params=cparams,
            cost_estimate=cost,
        )(idx_p, table_p)
        if return_padded:
            return logits, None
        return logits[:N, :V].reshape(B, T, V), None

    # Per-vocab-row logsumexp is O(V^2) wrapper work; stash it in pad lane V.
    lse_v = jax.scipy.special.logsumexp(table_f32, axis=-1)          # (V,)
    table_p = table_p.at[:V, V].set(lse_v)
    tgt_p = jnp.zeros((n_pad, 1), jnp.int32).at[:N, 0].set(
        targets.reshape(N).astype(jnp.int32))

    cost = pl.CostEstimate(
        flops=2 * n_pad * v_pad * v_pad + 4 * n_pad * v_pad,
        transcendentals=0,
        bytes_accessed=4 * (2 * n_pad + v_pad * v_pad + n_pad)
                       + out_bytes * n_pad * v_pad)
    kernel = functools.partial(_bigram_loss_kernel, lse_lane=V, n_real=N)
    logits, per_row_loss = pl.pallas_call(
        kernel,
        grid=grid,
        out_shape=(jax.ShapeDtypeStruct((n_pad, v_pad), logits_dtype),
                   jax.ShapeDtypeStruct((n_pad, 1), jnp.float32)),
        in_specs=[idx_spec, idx_spec, table_spec],
        out_specs=(logits_spec, loss_spec),
        compiler_params=cparams,
        cost_estimate=cost,
    )(idx_p, tgt_p, table_p)
    loss = jnp.sum(per_row_loss) / N               # padded rows contribute 0
    if return_padded:
        return logits, loss
    return logits[:N, :V], loss


def _reference_forward(idx, table, targets=None):
    logits = table[idx]                                   # (B, T, V)
    if targets is None:
        return logits, None
    B, T, C = logits.shape
    lg = logits.reshape(B * T, C)
    tg = targets.reshape(B * T)
    lse = jax.scipy.special.logsumexp(lg, axis=-1)
    tgt_logit = jnp.take_along_axis(lg, tg[:, None], axis=-1)[:, 0]
    loss = jnp.mean(lse - tgt_logit)
    return lg, loss


if __name__ == "__main__":
    vocab_size = 65
    B, T = 2, 8

    key = jax.random.PRNGKey(0)
    k_tab, k_idx, k_tgt = jax.random.split(key, 3)

    # nn.Embedding default init ~ N(0, 1)
    table = jax.random.normal(k_tab, (vocab_size, vocab_size), dtype=jnp.float32)
    idx = jax.random.randint(k_idx, (B, T), 0, vocab_size, dtype=jnp.int32)
    targets = jax.random.randint(k_tgt, (B, T), 0, vocab_size, dtype=jnp.int32)

    # With targets: logits (B*T, V) and scalar loss
    logits, loss = bigram_forward(idx, table, targets)
    jax.block_until_ready((logits, loss))

    # Without targets: logits (B, T, V), loss None
    logits_nt, loss_nt = bigram_forward(idx, table, None)
    jax.block_until_ready(logits_nt)

    # Check against pure-JAX reference
    ref_logits, ref_loss = _reference_forward(idx, table, targets)
    assert logits.shape == (B * T, vocab_size)
    assert logits_nt.shape == (B, T, vocab_size)
    assert loss_nt is None
    assert jnp.allclose(logits, ref_logits, atol=1e-5)
    assert jnp.allclose(logits_nt.reshape(B * T, vocab_size), ref_logits, atol=1e-5)
    assert jnp.allclose(loss, ref_loss, atol=1e-4)

    # Optional v5e/v6e bf16-logits variant: halves the store-bound writeback;
    # loss math stays f32 inside the kernel so the loss still matches tightly.
    logits_bf, loss_bf = bigram_forward(idx, table, targets,
                                        logits_dtype=jnp.bfloat16)
    jax.block_until_ready((logits_bf, loss_bf))
    assert logits_bf.dtype == jnp.bfloat16
    assert jnp.allclose(loss_bf, ref_loss, atol=1e-4)
    assert jnp.allclose(logits_bf.astype(jnp.float32), ref_logits,
                        rtol=1e-2, atol=1e-2)

    # TODO(synk): generate() is an autoregressive python loop with
    # torch.multinomial sampling; sampling stays host-side / plain JAX and is
    # not a kernel hot path.
    print("KERNEL_OK")
</pallas_src>

<mosaic_0001>
module attributes {stable_mosaic.version = 11 : i64} {
  func.func @_bigram_loss_kernel(%arg0: i32, %arg1: memref<16x1xi32, #tpu.memory_space<vmem>>, %arg2: memref<16x1xi32, #tpu.memory_space<vmem>>, %arg3: memref<128x128xf32, #tpu.memory_space<vmem>>, %arg4: memref<16x128xf32, #tpu.memory_space<vmem>>, %arg5: memref<16x1xf32, #tpu.memory_space<vmem>>) attributes {dimension_semantics = [#tpu.dimension_semantics<parallel>], iteration_bounds = array<i64: 1>, scalar_prefetch = 0 : i64, scratch_operands = 0 : i64, tpu.core_type = #tpu.core_type<tc>, window_params = [{transform_indices = @transform_0, window_bounds = array<i64: 16, 1>}, {transform_indices = @transform_1, window_bounds = array<i64: 16, 1>}, {pipeline_mode = #tpu.pipeline_mode<synchronous>, transform_indices = @transform_2, window_bounds = array<i64: 128, 128>}, {transform_indices = @transform_3, window_bounds = array<i64: 16, 128>}, {transform_indices = @transform_4, window_bounds = array<i64: 16, 1>}]} {
    %c0 = arith.constant 0 : index
    %c0_0 = arith.constant 0 : index
    %0 = vector.load %arg1[%c0, %c0_0] : memref<16x1xi32, #tpu.memory_space<vmem>>, vector<16x1xi32>
    %c0_1 = arith.constant 0 : index
    %c0_2 = arith.constant 0 : index
    %1 = vector.load %arg2[%c0_1, %c0_2] : memref<16x1xi32, #tpu.memory_space<vmem>>, vector<16x1xi32>
    %c0_3 = arith.constant 0 : index
    %c0_4 = arith.constant 0 : index
    %2 = vector.load %arg3[%c0_3, %c0_4] : memref<128x128xf32, #tpu.memory_space<vmem>>, vector<128x128xf32>
    %3 = tpu.iota {dimensions = array<i32: 1>} : vector<16x128xi32>
    %4 = vector.broadcast %0 : vector<16x1xi32> to vector<16x128xi32>
    %5 = arith.cmpi eq, %3, %4 : vector<16x128xi32>
    %6 = arith.extui %5 : vector<16x128xi1> to vector<16x128xi32>
    %7 = arith.sitofp %6 : vector<16x128xi32> to vector<16x128xf32>
    %cst = arith.constant dense<0.000000e+00> : vector<16x128xf32>
    %8 = tpu.matmul %7, %2, %cst {dimension_numbers = #tpu.dot_dimension_numbers<[1], [0], [0], [1], [0, 0, 1, 1], [], []>} : vector<16x128xf32>, vector<128x128xf32>, vector<16x128xf32> -> vector<16x128xf32>
    %c0_5 = arith.constant 0 : index
    %c0_6 = arith.constant 0 : index
    %9 = vector.load %arg4[%c0_5, %c0_6] : memref<16x128xf32, #tpu.memory_space<vmem>>, vector<16x128xf32>
    tpu.vector_store %arg4[%c0_5, %c0_6], %8 {strides = array<i32>} : memref<16x128xf32, #tpu.memory_space<vmem>>, vector<16x128xf32>,
    %c65_i32 = arith.constant 65 : i32
    %10 = vector.broadcast %c65_i32 : i32 to vector<16x128xi32>
    %11 = arith.cmpi eq, %3, %10 : vector<16x128xi32>
    %12 = vector.broadcast %1 : vector<16x1xi32> to vector<16x128xi32>
    %13 = arith.cmpi eq, %3, %12 : vector<16x128xi32>
    %cst_7 = arith.constant 0.000000e+00 : f32
    %14 = vector.broadcast %cst_7 : f32 to vector<16x128xf32>
    %15 = arith.subf %14, %8 : vector<16x128xf32>
    %cst_8 = arith.constant 0.000000e+00 : f32
    %16 = vector.broadcast %cst_8 : f32 to vector<16x128xf32>
    %17 = arith.select %13, %15, %16 : vector<16x128xi1>, vector<16x128xf32>
    %18 = arith.select %11, %8, %17 : vector<16x128xi1>, vector<16x128xf32>
    %cst_9 = arith.constant dense<0.000000e+00> : vector<16xf32>
    %19 = vector.multi_reduction <add>, %18, %cst_9 [1] : vector<16x128xf32> to vector<16xf32>
    %20 = vector.shape_cast %19 : vector<16xf32> to vector<16x1xf32>
    %c16_i32 = arith.constant 16 : i32
    %21 = arith.muli %arg0, %c16_i32 : i32
    %22 = tpu.iota {dimensions = array<i32: 0>} : vector<16x1xi32>
    %23 = vector.broadcast %21 : i32 to vector<16x1xi32>
    %24 = arith.addi %23, %22 : vector<16x1xi32>
    %c16_i32_10 = arith.constant 16 : i32
    %25 = vector.broadcast %c16_i32_10 : i32 to vector<16x1xi32>
    %26 = arith.cmpi slt, %24, %25 : vector<16x1xi32>
    %cst_11 = arith.constant 0.000000e+00 : f32
    %27 = vector.broadcast %cst_11 : f32 to vector<16x1xf32>
    %28 = arith.select %26, %20, %27 : vector<16x1xi1>, vector<16x1xf32>
    %c0_12 = arith.constant 0 : index
    %c0_13 = arith.constant 0 : index
    %29 = vector.load %arg5[%c0_12, %c0_13] : memref<16x1xf32, #tpu.memory_space<vmem>>, vector<16x1xf32>
    tpu.vector_store %arg5[%c0_12, %c0_13], %28 {strides = array<i32>} : memref<16x1xf32, #tpu.memory_space<vmem>>, vector<16x1xf32>,
    return
  }
  func.func @transform_0(%arg0: i32) -> (i32, i32) {
    %c0_i32 = arith.constant 0 : i32
    %c0_i32_0 = arith.constant 0 : i32
    return %arg0, %c0_i32 : i32, i32
  }
  func.func @transform_1(%arg0: i32) -> (i32, i32) {
    %c0_i32 = arith.constant 0 : i32
    %c0_i32_0 = arith.constant 0 : i32
    return %arg0, %c0_i32 : i32, i32
  }
  func.func @transform_2(%arg0: i32) -> (i32, i32) {
    %c0_i32 = arith.constant 0 : i32
    %c0_i32_0 = arith.constant 0 : i32
    %c0_i32_1 = arith.constant 0 : i32
    return %c0_i32, %c0_i32_0 : i32, i32
  }
  func.func @transform_3(%arg0: i32) -> (i32, i32) {
    %c0_i32 = arith.constant 0 : i32
    %c0_i32_0 = arith.constant 0 : i32
    return %arg0, %c0_i32 : i32, i32
  }
  func.func @transform_4(%arg0: i32) -> (i32, i32) {
    %c0_i32 = arith.constant 0 : i32
    %c0_i32_0 = arith.constant 0 : i32
    return %arg0, %c0_i32 : i32, i32
  }
}

</mosaic_0001>

<llo_original>
// kernel: tpu_custom_call.1
$region0: #{tpu_custom_call.1}
  #allocation0 [shape = 'u32[]', space=smem, size = 0x4, offset = 0x4, fixed_abs, tag = 'smem constant byte address 0x4 - core index']
  #allocation1 [shape = 'u32[144,128]{1,0:T(1,128)}', space=vmem, size = 0x12000, scoped, tag = 'internal scratch']
  %s0 = inlined_call_operand.vmem [shape: s32[16,1], index: 0, kind: input, shape index: {}]
  %s1 = inlined_call_operand.vmem [shape: s32[16,1], index: 1, kind: input, shape index: {}]
  %s2 = inlined_call_operand.hbm [shape: f32[128,128], index: 2, kind: input, shape index: {}]
  %s3 = inlined_call_operand.hbm [shape: f32[16,128], index: 3, kind: output, shape index: {0}]
  %s4 = inlined_call_operand.vmem [shape: f32[16,1], index: 4, kind: output, shape index: {1}]
  %5 = xla_tuple %s3, %s4
  %s6 = sld [smem:[#allocation0]]
  $region34: #{tpu_custom_call.1} parent=0
    _
  %s8 = ssub.s32 1, %s6
  %s9 = scalar_select 0, %s8, %s6
  $region1: #{tpu_custom_call.1} parent=0
    #allocation2 [shape = 'u8[65536]{0}', space=vmem, size = 0x10000, scoped, tag = 'input window, operand 2, single buffered']
    #allocation3 [shape = 's32[1]{0}', space=sflag, size = 0x4, scoped, tag = 'scoped memory for tpu_custom_call.1']
    #allocation4 [shape = 's32[1]{0}', space=sflag, size = 0x4, scoped, tag = 'scoped memory for tpu_custom_call.1']
    #allocation5 [shape = 'u8[8192]{0}', space=vmem, size = 0x2000, scoped, tag = 'output window, operand 0, single buffered']
    %10 = vsyncpa [#allocation3], 0
    %11 = vsyncpa [#allocation4], 0
    // Predicated region
    $region2: #{tpu_custom_call.1} parent=1 // pred_check
      _
    $region3: #{tpu_custom_call.1} parent=1 // pred_check_branch
      %13 = sbr.rel (0) target = $region5
    $region4: #{tpu_custom_call.1} parent=1 // pred_region
      _
    $region5: #{tpu_custom_call.1} parent=1 // pred_fallthru
      _
    // Predicated region
    $region6: #{tpu_custom_call.1} parent=1 // pred_check
      _
    $region7: #{tpu_custom_call.1} parent=1 // pred_check_branch
      %15 = sbr.rel (0) target = $region9
    $region8: #{tpu_custom_call.1} parent=1 // pred_region
      _
    $region9: #{tpu_custom_call.1} parent=1 // pred_fallthru
      _
    // Predicated region
    $region10: #{tpu_custom_call.1} parent=1 // pred_check
      _
    $region11: #{tpu_custom_call.1} parent=1 // pred_check_branch
      %17 = sbr.rel (0) target = $region13
    $region12: #{tpu_custom_call.1} parent=1 // pred_region
      %s19 = ssub.s32 2048, 2048
      %20 = vsyncadd [#allocation3], %s19
      %s21 = sshll.u32 [#allocation2], 4
      %s22 = int_to_ptr.vmem [resolvable:$true] %s21
      %27 = dma.hbm_to_vmem [thread:$0]  %s2, 2048, %s22, [#allocation3], 128, 128, 8
    $region13: #{tpu_custom_call.1} parent=1 // pred_fallthru
      _
    // Predicated region
    $region14: #{tpu_custom_call.1} parent=1 // pred_check
      _
    $region15: #{tpu_custom_call.1} parent=1 // pred_check_branch
      %29 = sbr.rel (0) target = $region17
    $region16: #{tpu_custom_call.1} parent=1 // pred_region
      %30 = dma.done [#allocation3], 2048
    $region17: #{tpu_custom_call.1} parent=1 // pred_fallthru
      _
    %v31 = vld [vmem:[%s0] sm:$0xff]
    %v32 = vld [vmem:[%s0 + $0x8] sm:$0xff]
    %v33 = vld [vmem:[%s1] sm:$0xff]
    %v34 = vld [vmem:[%s1 + $0x8] sm:$0xff]
    %v35 = vld [vmem:[#allocation2] sm:$0xff]
    %v36 = vld [vmem:[#allocation2 + $0x8] sm:$0xff]
    %v37 = vld [vmem:[#allocation2 + $0x10] sm:$0xff]
    %v38 = vld [vmem:[#allocation2 + $0x18] sm:$0xff]
    %v39 = vld [vmem:[#allocation2 + $0x20] sm:$0xff]
    %v40 = vld [vmem:[#allocation2 + $0x28] sm:$0xff]
    %v41 = vld [vmem:[#allocation2 + $0x30] sm:$0xff]
    %v42 = vld [vmem:[#allocation2 + $0x38] sm:$0xff]
    %v43 = vld [vmem:[#allocation2 + $0x40] sm:$0xff]
    %v44 = vld [vmem:[#allocation2 + $0x48] sm:$0xff]
    %v45 = vld [vmem:[#allocation2 + $0x50] sm:$0xff]
    %v46 = vld [vmem:[#allocation2 + $0x58] sm:$0xff]
    %v47 = vld [vmem:[#allocation2 + $0x60] sm:$0xff]
    %v48 = vld [vmem:[#allocation2 + $0x68] sm:$0xff]
    %v49 = vld [vmem:[#allocation2 + $0x70] sm:$0xff]
    %v50 = vld [vmem:[#allocation2 + $0x78] sm:$0xff]
    %v51 = vlaneseq
    %v52 = vand.u32 %v51, 127
    %53 = vset.pattern.permute.xlu0 0
    %54 = vperm.xlu0 %53, %v31
    %v55 = vpop.permute.xlu0 %54
    %56 = vset.pattern.permute.xlu0 0
    %57 = vperm.xlu0 %56, %v32
    %v58 = vpop.permute.xlu0 %57
    %vm59 = vcmp.eq.s32.totalorder %v52, %v55
    %vm60 = vcmp.eq.s32.totalorder %v52, %v58
    %v61 = vsel %vm59, 1, 0
    %v62 = vsel %vm60, 1, 0
    %v63 = vcvt.s32.f32 %v61
    %v64 = vcvt.s32.f32 %v62
    %65 = vmatprep.subr.mxu0 0.0
    %66 = vmatpush1.msra.mxu0 %v35
    %67 = vmatprep.subr.mxu0 0.0
    %68 = vmatpush1.msra.mxu0 %v36
    %69 = vmatprep.subr.mxu0 0.0
    %70 = vmatpush1.msra.mxu0 %v37
    %71 = vmatprep.subr.mxu0 0.0
    %72 = vmatpush1.msra.mxu0 %v38
    %73 = vmatprep.subr.mxu0 0.0
    %74 = vmatpush1.msra.mxu0 %v39
    %75 = vmatprep.subr.mxu0 0.0
    %76 = vmatpush1.msra.mxu0 %v40
    %77 = vmatprep.subr.mxu0 0.0
    %78 = vmatpush1.msra.mxu0 %v41
    %79 = vmatprep.subr.mxu0 0.0
    %80 = vmatpush1.msra.mxu0 %v42
    %81 = vmatprep.subr.mxu0 0.0
    %82 = vmatpush1.msra.mxu0 %v43
    %83 = vmatprep.subr.mxu0 0.0
    %84 = vmatpush1.msra.mxu0 %v44
    %85 = vmatprep.subr.mxu0 0.0
    %86 = vmatpush1.msra.mxu0 %v45
    %87 = vmatprep.subr.mxu0 0.0
    %88 = vmatpush1.msra.mxu0 %v46
    %89 = vmatprep.subr.mxu0 0.0
    %90 = vmatpush1.msra.mxu0 %v47
    %91 = vmatprep.subr.mxu0 0.0
    %92 = vmatpush1.msra.mxu0 %v48
    %93 = vmatprep.subr.mxu0 0.0
    %94 = vmatpush1.msra.mxu0 %v49
    %95 = vmatprep.subr.mxu0 0.0
    %96 = vmatpush1.msra.mxu0 %v50
    %97 = vmatprep.subr.mxu0 0.0
    %98 = vmatpush1.msra.mxu0 0.0
    %99 = vmatprep.subr.mxu0 0.0
    %100 = vmatpush1.msra.mxu0 0.0
    %101 = vmatprep.subr.mxu0 0.0
    %102 = vmatpush1.msra.mxu0 0.0
    %103 = vmatprep.subr.mxu0 0.0
    %104 = vmatpush1.msra.mxu0 0.0
    %105 = vmatprep.subr.mxu0 0.0
    %106 = vmatpush1.msra.mxu0 0.0
    %107 = vmatprep.subr.mxu0 0.0
    %108 = vmatpush1.msra.mxu0 0.0
    %109 = vmatprep.subr.mxu0 0.0
    %110 = vmatpush1.msra.mxu0 0.0
    %111 = vmatprep.subr.mxu0 0.0
    %112 = vmatpush1.msra.mxu0 0.0
    %113 = vmatprep.subr.mxu0 0.0
    %114 = vmatpush1.msra.mxu0 0.0
    %115 = vmatprep.subr.mxu0 0.0
    %116 = vmatpush1.msra.mxu0 0.0
    %117 = vmatprep.subr.mxu0 0.0
    %118 = vmatpush1.msra.mxu0 0.0
    %119 = vmatprep.subr.mxu0 0.0
    %120 = vmatpush1.msra.mxu0 0.0
    %121 = vmatprep.subr.mxu0 0.0
    %122 = vmatpush1.msra.mxu0 0.0
    %123 = vmatprep.subr.mxu0 0.0
    %124 = vmatpush1.msra.mxu0 0.0
    %125 = vmatprep.subr.mxu0 0.0
    %126 = vmatpush1.msra.mxu0 0.0
    %127 = vmatprep.subr.mxu0 0.0
    %128 = vmatpush1.msra.mxu0 0.0
    %129 = vmatprep.mubr.f32.mxu0 0.0
    %130 = vmatmul.mubr.f32.gmra.mrb[0].mxu0 %v63
    %v131 = vpop.f32.mrb[0].mxu0
    %v132 = vadd.f32 0.0, %v131
    %v133 = vpop.f32.mrb[0].mxu0
    %134 = vmatprep.mubr.f32.mxu0 0.0
    %135 = vmatmul.mubr.f32.gmra.mrb[0].mxu0 %v64
    %v136 = vpop.f32.mrb[0].mxu0
    %v137 = vadd.f32 0.0, %v136
    %v138 = vpop.f32.mrb[0].mxu0
    %139 = vdwg.mxu0
    %140 = vst [vmem:[#allocation5] sm:$0xff] %v132
    %141 = vst [vmem:[#allocation5 + $0x8] sm:$0xff] %v137
    %vm142 = vcmp.eq.s32.totalorder %v52, 65
    %143 = vset.pattern.permute.xlu0 0
    %144 = vperm.xlu0 %143, %v33
    %v145 = vpop.permute.xlu0 %144
    %146 = vset.pattern.permute.xlu0 0
    %147 = vperm.xlu0 %146, %v34
    %v148 = vpop.permute.xlu0 %147
    %vm149 = vcmp.eq.s32.totalorder %v52, %v145
    %vm150 = vcmp.eq.s32.totalorder %v52, %v148
    %v151 = vsub.f32 0.0, %v132
    %v152 = vsub.f32 0.0, %v137
    %v153 = vsel %vm149, %v151, 0.0
    %v154 = vsel %vm150, %v152, 0.0
    %v155 = vsel %vm142, %v132, %v153
    %v156 = vsel %vm142, %v137, %v154
    %157 = vadd.xlane.f32.xlu0 %v155
    %v158 = vpop.xlane.xlu0 %157
    %159 = vadd.xlane.f32.xlu0 %v156
    %v160 = vpop.xlane.xlu0 %159
    %s161 = smul.u32 0, 16
    %v162 = vlaneseq
    %v163 = vshrl.u32 %v162, 7
    %v164 = vadd.s32 %v163, 8
    %v165 = vstv %s161
    %v166 = vadd.s32 %v165, %v163
    %v167 = vadd.s32 %v165, %v164
    %vm168 = vcmp.lt.s32.totalorder %v166, 16
    %vm169 = vcmp.lt.s32.totalorder %v167, 16
    %v170 = vsel %vm168, %v158, 0.0
    %v171 = vsel %vm169, %v160, 0.0
    %vm172 = vcmask 7168
    %173 = vst.msk [vmem:[%s4] sm:$0xff] %vm172, %v170
    %174 = vst.msk [vmem:[%s4 + $0x8] sm:$0xff] %vm172, %v171
    // Predicated region
    $region18: #{tpu_custom_call.1} parent=1 // pred_check
      _
    $region19: #{tpu_custom_call.1} parent=1 // pred_check_branch
      %176 = sbr.rel (0) target = $region21
    $region20: #{tpu_custom_call.1} parent=1 // pred_region
      %s178 = ssub.s32 256, 256
      %179 = vsyncadd [#allocation4], %s178
      %s180 = sshll.u32 [#allocation5], 4
      %s181 = int_to_ptr.vmem [resolvable:$true] %s180
      %186 = dma.vmem_to_hbm [thread:$0]  %s181, 256, %s3, [#allocation4], 128, 128, 8
    $region21: #{tpu_custom_call.1} parent=1 // pred_fallthru
      _
    // Predicated region
    $region22: #{tpu_custom_call.1} parent=1 // pred_check
      _
    $region23: #{tpu_custom_call.1} parent=1 // pred_check_branch
      %188 = sbr.rel (0) target = $region25
    $region24: #{tpu_custom_call.1} parent=1 // pred_region
      _
    $region25: #{tpu_custom_call.1} parent=1 // pred_fallthru
      _
    // Predicated region
    $region26: #{tpu_custom_call.1} parent=1 // pred_check
      _
    $region27: #{tpu_custom_call.1} parent=1 // pred_check_branch
      %190 = sbr.rel (0) target = $region29
    $region28: #{tpu_custom_call.1} parent=1 // pred_region
      %191 = dma.done [#allocation4], 256
    $region29: #{tpu_custom_call.1} parent=1 // pred_fallthru
      _
    // Predicated region
    $region30: #{tpu_custom_call.1} parent=1 // pred_check
      _
    $region31: #{tpu_custom_call.1} parent=1 // pred_check_branch
      %193 = sbr.rel (0) target = $region33
    $region32: #{tpu_custom_call.1} parent=1 // pred_region
      _
    $region33: #{tpu_custom_call.1} parent=1 // pred_fallthru
      _
    %194 = vsyncpa [#allocation3], 1
    %195 = vsyncpa [#allocation4], 1

</llo_original>
